<compile_context>
chip_gen: v5e
topology: v5e:2x2
jax: 0.10.0
libtpu: 0.0.40
codegen_flags: <defaults>
</compile_context>

<pallas_src>
import functools

import jax
import jax.numpy as jnp
from jax.experimental import pallas as pl
from jax.experimental.pallas import tpu as pltpu


def relu_conv1x1_kernel(x_ref, w_ref, b_ref, o_ref):
    # x_ref: (M, C) f32, w_ref: (C, O_pad) f32, b_ref: (1, O_pad) f32
    x = jnp.maximum(x_ref[...], 0.0)                       # ReLU (VPU)
    acc = jnp.dot(x, w_ref[...],                           # 1x1 conv == matmul (MXU)
                  preferred_element_type=jnp.float32)
    o_ref[...] = acc + b_ref[...]                          # bias add (broadcast over M)


def prepare_conv1x1_params(w_oihw, bias, lane=128):
    """One-time parameter prep (outside the hot path).

    Returns (w_co_padded, b_padded, out_channels) with the weight already
    transposed to (C, O_pad) and O padded up to a multiple of 128 lanes.
    """
    O, C = int(w_oihw.shape[0]), int(w_oihw.shape[1])
    O_pad = ((O + lane - 1) // lane) * lane
    w_co = jnp.transpose(w_oihw.reshape(O, C), (1, 0))          # (C, O)  -- done ONCE
    w_co = jnp.pad(w_co, ((0, 0), (0, O_pad - O)))              # (C, O_pad)
    b_pad = jnp.pad(bias, (0, O_pad - O)).reshape(1, O_pad)     # (1, O_pad)
    return w_co.astype(jnp.float32), b_pad.astype(jnp.float32), O


@functools.partial(jax.jit, static_argnums=(3,))
def relu_conv1x1(x_nchw, w_co_pad, b_pad, out_channels):
    N, C, H, W = x_nchw.shape
    M = N * H * W
    O_pad = w_co_pad.shape[1]

    # Layout plumbing: with H == W == 1 (this module) NCHW -> (M, C) is a pure
    # reshape; general case falls back to a transpose.
    if H == 1 and W == 1:
        x_mc = x_nchw.reshape(M, C)
    else:
        x_mc = jnp.transpose(x_nchw, (0, 2, 3, 1)).reshape(M, C)

    cost = pl.CostEstimate(
        flops=2 * M * C * O_pad,
        transcendentals=0,
        bytes_accessed=C * O_pad * 4 + M * C * 4 + M * O_pad * 4,
    )

    out_mo = pl.pallas_call(
        relu_conv1x1_kernel,
        out_shape=jax.ShapeDtypeStruct((M, O_pad), jnp.float32),
        # Single full-extent block (legal even when not (8,128)-aligned);
        # everything fits trivially in VMEM, so no grid / no tiling over O.
        in_specs=[
            pl.BlockSpec((M, C), lambda: (0, 0),
                         memory_space=pltpu.MemorySpace.VMEM),
            pl.BlockSpec((C, O_pad), lambda: (0, 0),
                         memory_space=pltpu.MemorySpace.VMEM),
            pl.BlockSpec((1, O_pad), lambda: (0, 0),
                         memory_space=pltpu.MemorySpace.VMEM),
        ],
        out_specs=pl.BlockSpec((M, O_pad), lambda: (0, 0),
                               memory_space=pltpu.MemorySpace.VMEM),
        cost_estimate=cost,
    )(x_mc, w_co_pad, b_pad)

    out = out_mo[:, :out_channels]                              # drop lane padding
    if H == 1 and W == 1:
        return out.reshape(N, out_channels, H, W)               # pure reshape
    return jnp.transpose(out.reshape(N, H, W, out_channels), (0, 3, 1, 2))


if __name__ == "__main__":
    key = jax.random.PRNGKey(0)
    kx, kw, kb = jax.random.split(key, 3)

    # Shapes implied by the module's forward: x339 is [1, 144, 1, 1].
    N, C_in, H, W = 1, 144, 1, 1
    C_out = 1512

    x = jax.random.normal(kx, (N, C_in, H, W), dtype=jnp.float32)
    # Deterministic synthetic parameters (Conv2d(144, 1512, 1) shapes).
    w = jax.random.normal(kw, (C_out, C_in, 1, 1), dtype=jnp.float32) * 0.05
    b = jax.random.normal(kb, (C_out,), dtype=jnp.float32) * 0.05

    # One-time parameter prep (constant folding of transpose + lane padding).
    w_prep, b_prep, out_ch = prepare_conv1x1_params(w, b)
    w_prep = jax.block_until_ready(w_prep)
    b_prep = jax.block_until_ready(b_prep)

    out = relu_conv1x1(x, w_prep, b_prep, out_ch)
    out = jax.block_until_ready(out)

    # Reference check (pure JAX, f32) for sanity.
    x_relu = jnp.maximum(x, 0.0)
    ref = (jnp.einsum("nchw,oc->nohw", x_relu, w.reshape(C_out, C_in))
           + b.reshape(1, C_out, 1, 1))
    assert out.shape == (N, C_out, H, W), out.shape
    assert jnp.allclose(out, ref, atol=1e-4, rtol=1e-4)

    print("KERNEL_OK")
</pallas_src>

<mosaic_0001>
module attributes {stable_mosaic.version = 11 : i64} {
  func.func @relu_conv1x1_kernel(%arg0: memref<1x144xf32, #tpu.memory_space<vmem>>, %arg1: memref<144x1536xf32, #tpu.memory_space<vmem>>, %arg2: memref<1x1536xf32, #tpu.memory_space<vmem>>, %arg3: memref<1x1536xf32, #tpu.memory_space<vmem>>) attributes {dimension_semantics = [], scalar_prefetch = 0 : i64, scratch_operands = 0 : i64, tpu.core_type = #tpu.core_type<tc>} {
    %c0 = arith.constant 0 : index
    %c0_0 = arith.constant 0 : index
    %0 = vector.load %arg0[%c0, %c0_0] : memref<1x144xf32, #tpu.memory_space<vmem>>, vector<1x144xf32>
    %cst = arith.constant 0.000000e+00 : f32
    %1 = vector.broadcast %cst : f32 to vector<1x144xf32>
    %2 = arith.maximumf %0, %1 : vector<1x144xf32>
    %c0_1 = arith.constant 0 : index
    %c0_2 = arith.constant 0 : index
    %3 = vector.load %arg1[%c0_1, %c0_2] : memref<144x1536xf32, #tpu.memory_space<vmem>>, vector<144x1536xf32>
    %cst_3 = arith.constant dense<0.000000e+00> : vector<1x1536xf32>
    %4 = tpu.matmul %2, %3, %cst_3 {dimension_numbers = #tpu.dot_dimension_numbers<[1], [0], [0], [1], [0, 0, 1, 1], [], []>} : vector<1x144xf32>, vector<144x1536xf32>, vector<1x1536xf32> -> vector<1x1536xf32>
    %c0_4 = arith.constant 0 : index
    %c0_5 = arith.constant 0 : index
    %5 = vector.load %arg2[%c0_4, %c0_5] : memref<1x1536xf32, #tpu.memory_space<vmem>>, vector<1x1536xf32>
    %6 = arith.addf %4, %5 : vector<1x1536xf32>
    %c0_6 = arith.constant 0 : index
    %c0_7 = arith.constant 0 : index
    %7 = vector.load %arg3[%c0_6, %c0_7] : memref<1x1536xf32, #tpu.memory_space<vmem>>, vector<1x1536xf32>
    tpu.vector_store %arg3[%c0_6, %c0_7], %6 {strides = array<i32>} : memref<1x1536xf32, #tpu.memory_space<vmem>>, vector<1x1536xf32>,
    return
  }
}

</mosaic_0001>

<llo_original>
// kernel: relu_conv1x1.1
$region0: #{relu_conv1x1.1}
  #allocation0 [shape = 'u32[]', space=smem, size = 0x4, offset = 0x4, fixed_abs, tag = 'smem constant byte address 0x4 - core index']
  #allocation1 [shape = 'u32[72,128]{1,0:T(1,128)}', space=vmem, size = 0x9000, scoped, tag = 'internal scratch']
  %s0 = inlined_call_operand.hbm [shape: f32[1,144], index: 0, kind: input, shape index: {}]
  %s1 = inlined_call_operand.hbm [shape: f32[144,1536], index: 1, kind: input, shape index: {}]
  %s2 = inlined_call_operand.hbm [shape: f32[1,1536], index: 2, kind: input, shape index: {}]
  %s3 = inlined_call_operand.vmem [shape: f32[1,1536], index: 3, kind: output, shape index: {}]
  %s4 = sld [smem:[#allocation0]]
  $region34: #{relu_conv1x1.1} parent=0
    _
  %s6 = ssub.s32 1, %s4
  %s7 = scalar_select 0, %s6, %s4
  $region1: #{relu_conv1x1.1} parent=0
    #allocation2 [shape = 'u8[1024]{0}', space=vmem, size = 0x400, scoped, tag = 'input window, operand 0, single buffered']
    #allocation3 [shape = 's32[1]{0}', space=sflag, size = 0x4, scoped, tag = 'scoped memory for relu_conv1x1.1']
    #allocation4 [shape = 'u8[884736]{0}', space=vmem, size = 0xd8000, scoped, tag = 'input window, operand 1, single buffered']
    #allocation5 [shape = 's32[1]{0}', space=sflag, size = 0x4, scoped, tag = 'scoped memory for relu_conv1x1.1']
    #allocation6 [shape = 'u8[6144]{0}', space=vmem, size = 0x1800, scoped, tag = 'input window, operand 2, single buffered']
    %8 = vsyncpa [#allocation3], 0
    %9 = vsyncpa [#allocation5], 0
    // Predicated region
    $region2: #{relu_conv1x1.1} parent=1 // pred_check
      _
    $region3: #{relu_conv1x1.1} parent=1 // pred_check_branch
      %11 = sbr.rel (0) target = $region5
    $region4: #{relu_conv1x1.1} parent=1 // pred_region
      %13 = vsyncadd [#allocation3], 0
      %s15 = sshll.u32 %s0, 4
      %s16 = int_to_ptr.hbm [resolvable:$true] %s15
      %s17 = sshll.u32 [#allocation2], 4
      %s18 = int_to_ptr.vmem [resolvable:$true] %s17
      %20 = dma.hbm_to_vmem [thread:$0]  %s16, 32, %s18, [#allocation3]
    $region5: #{relu_conv1x1.1} parent=1 // pred_fallthru
      _
    // Predicated region
    $region6: #{relu_conv1x1.1} parent=1 // pred_check
      _
    $region7: #{relu_conv1x1.1} parent=1 // pred_check_branch
      %22 = sbr.rel (0) target = $region9
    $region8: #{relu_conv1x1.1} parent=1 // pred_region
      %24 = vsyncadd [#allocation5], 0
      %s25 = sshll.u32 %s1, 4
      %s26 = int_to_ptr.hbm [resolvable:$true] %s25
      %s27 = sshll.u32 [#allocation4], 4
      %s28 = int_to_ptr.vmem [resolvable:$true] %s27
      %33 = dma.hbm_to_vmem [thread:$0]  %s26, 27648, %s28, [#allocation5], 1536, 1536, 96
    $region9: #{relu_conv1x1.1} parent=1 // pred_fallthru
      _
    // Predicated region
    $region10: #{relu_conv1x1.1} parent=1 // pred_check
      _
    $region11: #{relu_conv1x1.1} parent=1 // pred_check_branch
      %35 = sbr.rel (0) target = $region13
    $region12: #{relu_conv1x1.1} parent=1 // pred_region
      %37 = vsyncadd [#allocation5], 0
      %s39 = sshll.u32 %s2, 4
      %s40 = int_to_ptr.hbm [resolvable:$true] %s39
      %s41 = sshll.u32 [#allocation6], 4
      %s42 = int_to_ptr.vmem [resolvable:$true] %s41
      %44 = dma.hbm_to_vmem [thread:$0]  %s40, 192, %s42, [#allocation5]
    $region13: #{relu_conv1x1.1} parent=1 // pred_fallthru
      _
    // Predicated region
    $region14: #{relu_conv1x1.1} parent=1 // pred_check
      _
    $region15: #{relu_conv1x1.1} parent=1 // pred_check_branch
      %46 = sbr.rel (0) target = $region17
    $region16: #{relu_conv1x1.1} parent=1 // pred_region
      %48 = dma.done [#allocation3], 32
    $region17: #{relu_conv1x1.1} parent=1 // pred_fallthru
      _
    // Predicated region
    $region18: #{relu_conv1x1.1} parent=1 // pred_check
      _
    $region19: #{relu_conv1x1.1} parent=1 // pred_check_branch
      %50 = sbr.rel (0) target = $region21
    $region20: #{relu_conv1x1.1} parent=1 // pred_region
      %52 = dma.done [#allocation5], 27648
    $region21: #{relu_conv1x1.1} parent=1 // pred_fallthru
      _
    // Predicated region
    $region22: #{relu_conv1x1.1} parent=1 // pred_check
      _
    $region23: #{relu_conv1x1.1} parent=1 // pred_check_branch
      %54 = sbr.rel (0) target = $region25
    $region24: #{relu_conv1x1.1} parent=1 // pred_region
      %56 = dma.done [#allocation5], 192
    $region25: #{relu_conv1x1.1} parent=1 // pred_fallthru
      _
    %v57 = vld [vmem:[#allocation2] sm:$0x3]
    %v58 = vmax.f32 %v57, 0.0
    %v59 = vld [vmem:[#allocation4] sm:$0xff]
    %v60 = vld [vmem:[#allocation4 + $0x8] sm:$0xff]
    %v61 = vld [vmem:[#allocation4 + $0x10] sm:$0xff]
    %v62 = vld [vmem:[#allocation4 + $0x18] sm:$0xff]
    %v63 = vld [vmem:[#allocation4 + $0x20] sm:$0xff]
    %v64 = vld [vmem:[#allocation4 + $0x28] sm:$0xff]
    %v65 = vld [vmem:[#allocation4 + $0x30] sm:$0xff]
    %v66 = vld [vmem:[#allocation4 + $0x38] sm:$0xff]
    %v67 = vld [vmem:[#allocation4 + $0x40] sm:$0xff]
    %v68 = vld [vmem:[#allocation4 + $0x48] sm:$0xff]
    %v69 = vld [vmem:[#allocation4 + $0x50] sm:$0xff]
    %v70 = vld [vmem:[#allocation4 + $0x58] sm:$0xff]
    %v71 = vld [vmem:[#allocation4 + $0x60] sm:$0xff]
    %v72 = vld [vmem:[#allocation4 + $0x68] sm:$0xff]
    %v73 = vld [vmem:[#allocation4 + $0x70] sm:$0xff]
    %v74 = vld [vmem:[#allocation4 + $0x78] sm:$0xff]
    %v75 = vld [vmem:[#allocation4 + $0x80] sm:$0xff]
    %v76 = vld [vmem:[#allocation4 + $0x88] sm:$0xff]
    %v77 = vld [vmem:[#allocation4 + $0x90] sm:$0xff]
    %v78 = vld [vmem:[#allocation4 + $0x98] sm:$0xff]
    %v79 = vld [vmem:[#allocation4 + $0xa0] sm:$0xff]
    %v80 = vld [vmem:[#allocation4 + $0xa8] sm:$0xff]
    %v81 = vld [vmem:[#allocation4 + $0xb0] sm:$0xff]
    %v82 = vld [vmem:[#allocation4 + $0xb8] sm:$0xff]
    %v83 = vld [vmem:[#allocation4 + $0xc0] sm:$0xff]
    %v84 = vld [vmem:[#allocation4 + $0xc8] sm:$0xff]
    %v85 = vld [vmem:[#allocation4 + $0xd0] sm:$0xff]
    %v86 = vld [vmem:[#allocation4 + $0xd8] sm:$0xff]
    %v87 = vld [vmem:[#allocation4 + $0xe0] sm:$0xff]
    %v88 = vld [vmem:[#allocation4 + $0xe8] sm:$0xff]
    %v89 = vld [vmem:[#allocation4 + $0xf0] sm:$0xff]
    %v90 = vld [vmem:[#allocation4 + $0xf8] sm:$0xff]
    %v91 = vld [vmem:[#allocation4 + $0x100] sm:$0xff]
    %v92 = vld [vmem:[#allocation4 + $0x108] sm:$0xff]
    %v93 = vld [vmem:[#allocation4 + $0x110] sm:$0xff]
    %v94 = vld [vmem:[#allocation4 + $0x118] sm:$0xff]
    %v95 = vld [vmem:[#allocation4 + $0x120] sm:$0xff]
    %v96 = vld [vmem:[#allocation4 + $0x128] sm:$0xff]
    %v97 = vld [vmem:[#allocation4 + $0x130] sm:$0xff]
    %v98 = vld [vmem:[#allocation4 + $0x138] sm:$0xff]
    %v99 = vld [vmem:[#allocation4 + $0x140] sm:$0xff]
    %v100 = vld [vmem:[#allocation4 + $0x148] sm:$0xff]
    %v101 = vld [vmem:[#allocation4 + $0x150] sm:$0xff]
    %v102 = vld [vmem:[#allocation4 + $0x158] sm:$0xff]
    %v103 = vld [vmem:[#allocation4 + $0x160] sm:$0xff]
    %v104 = vld [vmem:[#allocation4 + $0x168] sm:$0xff]
    %v105 = vld [vmem:[#allocation4 + $0x170] sm:$0xff]
    %v106 = vld [vmem:[#allocation4 + $0x178] sm:$0xff]
    %v107 = vld [vmem:[#allocation4 + $0x180] sm:$0xff]
    %v108 = vld [vmem:[#allocation4 + $0x188] sm:$0xff]
    %v109 = vld [vmem:[#allocation4 + $0x190] sm:$0xff]
    %v110 = vld [vmem:[#allocation4 + $0x198] sm:$0xff]
    %v111 = vld [vmem:[#allocation4 + $0x1a0] sm:$0xff]
    %v112 = vld [vmem:[#allocation4 + $0x1a8] sm:$0xff]
    %v113 = vld [vmem:[#allocation4 + $0x1b0] sm:$0xff]
    %v114 = vld [vmem:[#allocation4 + $0x1b8] sm:$0xff]
    %v115 = vld [vmem:[#allocation4 + $0x1c0] sm:$0xff]
    %v116 = vld [vmem:[#allocation4 + $0x1c8] sm:$0xff]
    %v117 = vld [vmem:[#allocation4 + $0x1d0] sm:$0xff]
    %v118 = vld [vmem:[#allocation4 + $0x1d8] sm:$0xff]
    %v119 = vld [vmem:[#allocation4 + $0x1e0] sm:$0xff]
    %v120 = vld [vmem:[#allocation4 + $0x1e8] sm:$0xff]
    %v121 = vld [vmem:[#allocation4 + $0x1f0] sm:$0xff]
    %v122 = vld [vmem:[#allocation4 + $0x1f8] sm:$0xff]
    %v123 = vld [vmem:[#allocation4 + $0x200] sm:$0xff]
    %v124 = vld [vmem:[#allocation4 + $0x208] sm:$0xff]
    %v125 = vld [vmem:[#allocation4 + $0x210] sm:$0xff]
    %v126 = vld [vmem:[#allocation4 + $0x218] sm:$0xff]
    %v127 = vld [vmem:[#allocation4 + $0x220] sm:$0xff]
    %v128 = vld [vmem:[#allocation4 + $0x228] sm:$0xff]
    %v129 = vld [vmem:[#allocation4 + $0x230] sm:$0xff]
    %v130 = vld [vmem:[#allocation4 + $0x238] sm:$0xff]
    %v131 = vld [vmem:[#allocation4 + $0x240] sm:$0xff]
    %v132 = vld [vmem:[#allocation4 + $0x248] sm:$0xff]
    %v133 = vld [vmem:[#allocation4 + $0x250] sm:$0xff]
    %v134 = vld [vmem:[#allocation4 + $0x258] sm:$0xff]
    %v135 = vld [vmem:[#allocation4 + $0x260] sm:$0xff]
    %v136 = vld [vmem:[#allocation4 + $0x268] sm:$0xff]
    %v137 = vld [vmem:[#allocation4 + $0x270] sm:$0xff]
    %v138 = vld [vmem:[#allocation4 + $0x278] sm:$0xff]
    %v139 = vld [vmem:[#allocation4 + $0x280] sm:$0xff]
    %v140 = vld [vmem:[#allocation4 + $0x288] sm:$0xff]
    %v141 = vld [vmem:[#allocation4 + $0x290] sm:$0xff]
    %v142 = vld [vmem:[#allocation4 + $0x298] sm:$0xff]
    %v143 = vld [vmem:[#allocation4 + $0x2a0] sm:$0xff]
    %v144 = vld [vmem:[#allocation4 + $0x2a8] sm:$0xff]
    %v145 = vld [vmem:[#allocation4 + $0x2b0] sm:$0xff]
    %v146 = vld [vmem:[#allocation4 + $0x2b8] sm:$0xff]
    %v147 = vld [vmem:[#allocation4 + $0x2c0] sm:$0xff]
    %v148 = vld [vmem:[#allocation4 + $0x2c8] sm:$0xff]
    %v149 = vld [vmem:[#allocation4 + $0x2d0] sm:$0xff]
    %v150 = vld [vmem:[#allocation4 + $0x2d8] sm:$0xff]
    %v151 = vld [vmem:[#allocation4 + $0x2e0] sm:$0xff]
    %v152 = vld [vmem:[#allocation4 + $0x2e8] sm:$0xff]
    %v153 = vld [vmem:[#allocation4 + $0x2f0] sm:$0xff]
    %v154 = vld [vmem:[#allocation4 + $0x2f8] sm:$0xff]
    %v155 = vld [vmem:[#allocation4 + $0x300] sm:$0xff]
    %v156 = vld [vmem:[#allocation4 + $0x308] sm:$0xff]
    %v157 = vld [vmem:[#allocation4 + $0x310] sm:$0xff]
    %v158 = vld [vmem:[#allocation4 + $0x318] sm:$0xff]
    %v159 = vld [vmem:[#allocation4 + $0x320] sm:$0xff]
    %v160 = vld [vmem:[#allocation4 + $0x328] sm:$0xff]
    %v161 = vld [vmem:[#allocation4 + $0x330] sm:$0xff]
    %v162 = vld [vmem:[#allocation4 + $0x338] sm:$0xff]
    %v163 = vld [vmem:[#allocation4 + $0x340] sm:$0xff]
    %v164 = vld [vmem:[#allocation4 + $0x348] sm:$0xff]
    %v165 = vld [vmem:[#allocation4 + $0x350] sm:$0xff]
    %v166 = vld [vmem:[#allocation4 + $0x358] sm:$0xff]
    %v167 = vld [vmem:[#allocation4 + $0x360] sm:$0xff]
    %v168 = vld [vmem:[#allocation4 + $0x368] sm:$0xff]
    %v169 = vld [vmem:[#allocation4 + $0x370] sm:$0xff]
    %v170 = vld [vmem:[#allocation4 + $0x378] sm:$0xff]
    %v171 = vld [vmem:[#allocation4 + $0x380] sm:$0xff]
    %v172 = vld [vmem:[#allocation4 + $0x388] sm:$0xff]
    %v173 = vld [vmem:[#allocation4 + $0x390] sm:$0xff]
    %v174 = vld [vmem:[#allocation4 + $0x398] sm:$0xff]
    %v175 = vld [vmem:[#allocation4 + $0x3a0] sm:$0xff]
    %v176 = vld [vmem:[#allocation4 + $0x3a8] sm:$0xff]
    %v177 = vld [vmem:[#allocation4 + $0x3b0] sm:$0xff]
    %v178 = vld [vmem:[#allocation4 + $0x3b8] sm:$0xff]
    %v179 = vld [vmem:[#allocation4 + $0x3c0] sm:$0xff]
    %v180 = vld [vmem:[#allocation4 + $0x3c8] sm:$0xff]
    %v181 = vld [vmem:[#allocation4 + $0x3d0] sm:$0xff]
    %v182 = vld [vmem:[#allocation4 + $0x3d8] sm:$0xff]
    %v183 = vld [vmem:[#allocation4 + $0x3e0] sm:$0xff]
    %v184 = vld [vmem:[#allocation4 + $0x3e8] sm:$0xff]
    %v185 = vld [vmem:[#allocation4 + $0x3f0] sm:$0xff]
    %v186 = vld [vmem:[#allocation4 + $0x3f8] sm:$0xff]
    %v187 = vld [vmem:[#allocation4 + $0x400] sm:$0xff]
    %v188 = vld [vmem:[#allocation4 + $0x408] sm:$0xff]
    %v189 = vld [vmem:[#allocation4 + $0x410] sm:$0xff]
    %v190 = vld [vmem:[#allocation4 + $0x418] sm:$0xff]
    %v191 = vld [vmem:[#allocation4 + $0x420] sm:$0xff]
    %v192 = vld [vmem:[#allocation4 + $0x428] sm:$0xff]
    %v193 = vld [vmem:[#allocation4 + $0x430] sm:$0xff]
    %v194 = vld [vmem:[#allocation4 + $0x438] sm:$0xff]
    %v195 = vld [vmem:[#allocation4 + $0x440] sm:$0xff]
    %v196 = vld [vmem:[#allocation4 + $0x448] sm:$0xff]
    %v197 = vld [vmem:[#allocation4 + $0x450] sm:$0xff]
    %v198 = vld [vmem:[#allocation4 + $0x458] sm:$0xff]
    %v199 = vld [vmem:[#allocation4 + $0x460] sm:$0xff]
    %v200 = vld [vmem:[#allocation4 + $0x468] sm:$0xff]
    %v201 = vld [vmem:[#allocation4 + $0x470] sm:$0xff]
    %v202 = vld [vmem:[#allocation4 + $0x478] sm:$0xff]
    %v203 = vld [vmem:[#allocation4 + $0x480] sm:$0xff]
    %v204 = vld [vmem:[#allocation4 + $0x488] sm:$0xff]
    %v205 = vld [vmem:[#allocation4 + $0x490] sm:$0xff]
    %v206 = vld [vmem:[#allocation4 + $0x498] sm:$0xff]
    %v207 = vld [vmem:[#allocation4 + $0x4a0] sm:$0xff]
    %v208 = vld [vmem:[#allocation4 + $0x4a8] sm:$0xff]
    %v209 = vld [vmem:[#allocation4 + $0x4b0] sm:$0xff]
    %v210 = vld [vmem:[#allocation4 + $0x4b8] sm:$0xff]
    %v211 = vld [vmem:[#allocation4 + $0x4c0] sm:$0xff]
    %v212 = vld [vmem:[#allocation4 + $0x4c8] sm:$0xff]
    %v213 = vld [vmem:[#allocation4 + $0x4d0] sm:$0xff]
    %v214 = vld [vmem:[#allocation4 + $0x4d8] sm:$0xff]
    %v215 = vld [vmem:[#allocation4 + $0x4e0] sm:$0xff]
    %v216 = vld [vmem:[#allocation4 + $0x4e8] sm:$0xff]
    %v217 = vld [vmem:[#allocation4 + $0x4f0] sm:$0xff]
    %v218 = vld [vmem:[#allocation4 + $0x4f8] sm:$0xff]
    %v219 = vld [vmem:[#allocation4 + $0x500] sm:$0xff]
    %v220 = vld [vmem:[#allocation4 + $0x508] sm:$0xff]
    %v221 = vld [vmem:[#allocation4 + $0x510] sm:$0xff]
    %v222 = vld [vmem:[#allocation4 + $0x518] sm:$0xff]
    %v223 = vld [vmem:[#allocation4 + $0x520] sm:$0xff]
    %v224 = vld [vmem:[#allocation4 + $0x528] sm:$0xff]
    %v225 = vld [vmem:[#allocation4 + $0x530] sm:$0xff]
    %v226 = vld [vmem:[#allocation4 + $0x538] sm:$0xff]
    %v227 = vld [vmem:[#allocation4 + $0x540] sm:$0xff]
    %v228 = vld [vmem:[#allocation4 + $0x548] sm:$0xff]
    %v229 = vld [vmem:[#allocation4 + $0x550] sm:$0xff]
    %v230 = vld [vmem:[#allocation4 + $0x558] sm:$0xff]
    %v231 = vld [vmem:[#allocation4 + $0x560] sm:$0xff]
    %v232 = vld [vmem:[#allocation4 + $0x568] sm:$0xff]
    %v233 = vld [vmem:[#allocation4 + $0x570] sm:$0xff]
    %v234 = vld [vmem:[#allocation4 + $0x578] sm:$0xff]
    %v235 = vld [vmem:[#allocation4 + $0x580] sm:$0xff]
    %v236 = vld [vmem:[#allocation4 + $0x588] sm:$0xff]
    %v237 = vld [vmem:[#allocation4 + $0x590] sm:$0xff]
    %v238 = vld [vmem:[#allocation4 + $0x598] sm:$0xff]
    %v239 = vld [vmem:[#allocation4 + $0x5a0] sm:$0xff]
    %v240 = vld [vmem:[#allocation4 + $0x5a8] sm:$0xff]
    %v241 = vld [vmem:[#allocation4 + $0x5b0] sm:$0xff]
    %v242 = vld [vmem:[#allocation4 + $0x5b8] sm:$0xff]
    %v243 = vld [vmem:[#allocation4 + $0x5c0] sm:$0xff]
    %v244 = vld [vmem:[#allocation4 + $0x5c8] sm:$0xff]
    %v245 = vld [vmem:[#allocation4 + $0x5d0] sm:$0xff]
    %v246 = vld [vmem:[#allocation4 + $0x5d8] sm:$0xff]
    %v247 = vld [vmem:[#allocation4 + $0x5e0] sm:$0xff]
    %v248 = vld [vmem:[#allocation4 + $0x5e8] sm:$0xff]
    %v249 = vld [vmem:[#allocation4 + $0x5f0] sm:$0xff]
    %v250 = vld [vmem:[#allocation4 + $0x5f8] sm:$0xff]
    %v251 = vld [vmem:[#allocation4 + $0x600] sm:$0xff]
    %v252 = vld [vmem:[#allocation4 + $0x608] sm:$0xff]
    %v253 = vld [vmem:[#allocation4 + $0x610] sm:$0xff]
    %v254 = vld [vmem:[#allocation4 + $0x618] sm:$0xff]
    %v255 = vld [vmem:[#allocation4 + $0x620] sm:$0xff]
    %v256 = vld [vmem:[#allocation4 + $0x628] sm:$0xff]
    %v257 = vld [vmem:[#allocation4 + $0x630] sm:$0xff]
    %v258 = vld [vmem:[#allocation4 + $0x638] sm:$0xff]
    %v259 = vld [vmem:[#allocation4 + $0x640] sm:$0xff]
    %v260 = vld [vmem:[#allocation4 + $0x648] sm:$0xff]
    %v261 = vld [vmem:[#allocation4 + $0x650] sm:$0xff]
    %v262 = vld [vmem:[#allocation4 + $0x658] sm:$0xff]
    %v263 = vld [vmem:[#allocation4 + $0x660] sm:$0xff]
    %v264 = vld [vmem:[#allocation4 + $0x668] sm:$0xff]
    %v265 = vld [vmem:[#allocation4 + $0x670] sm:$0xff]
    %v266 = vld [vmem:[#allocation4 + $0x678] sm:$0xff]
    %v267 = vld [vmem:[#allocation4 + $0x680] sm:$0xff]
    %v268 = vld [vmem:[#allocation4 + $0x688] sm:$0xff]
    %v269 = vld [vmem:[#allocation4 + $0x690] sm:$0xff]
    %v270 = vld [vmem:[#allocation4 + $0x698] sm:$0xff]
    %v271 = vld [vmem:[#allocation4 + $0x6a0] sm:$0xff]
    %v272 = vld [vmem:[#allocation4 + $0x6a8] sm:$0xff]
    %v273 = vld [vmem:[#allocation4 + $0x6b0] sm:$0xff]
    %v274 = vld [vmem:[#allocation4 + $0x6b8] sm:$0xff]
    %v275 = vld [vmem:[#allocation6] sm:$0xff]
    %v276 = vld [vmem:[#allocation6 + $0x8] sm:$0xf]
    %v278 = vperm.slane %v58, 0
    %v279 = vperm.slane %v58, 1
    %v283 = vperm.slane %v275, 0
    %v284 = vperm.slane %v275, 1
    %v285 = vperm.slane %v275, 2
    %v286 = vperm.slane %v275, 3
    %v287 = vperm.slane %v275, 4
    %v288 = vperm.slane %v275, 5
    %v289 = vperm.slane %v275, 6
    %v290 = vperm.slane %v275, 7
    %v291 = vperm.slane %v276, 0
    %v292 = vperm.slane %v276, 1
    %v293 = vperm.slane %v276, 2
    %v294 = vperm.slane %v276, 3
    %vm307 = vcmask 130048
    %v308 = vsel %vm307, %v279, 0
    %310 = vmatpush.msra.mxu0 %v239
    %311 = vmatpush.msra.mxu0 %v227
    %312 = vmatpush.msra.mxu0 %v215
    %313 = vmatpush.msra.mxu0 %v203
    %314 = vmatpush.msra.mxu0 %v191
    %315 = vmatpush.msra.mxu0 %v179
    %316 = vmatpush.msra.mxu0 %v167
    %317 = vmatpush.msra.mxu0 %v155
    %318 = vmatpush.msra.mxu0 %v143
    %319 = vmatpush.msra.mxu0 %v131
    %320 = vmatpush.msra.mxu0 %v119
    %321 = vmatpush.msra.mxu0 %v107
    %322 = vmatpush.msra.mxu0 %v95
    %323 = vmatpush.msra.mxu0 %v83
    %324 = vmatpush.msra.mxu0 %v71
    %325 = vmatpush.msra.mxu0 %v59
    %326 = vmatmul.f32.gmra.mxu0 %v278
    %v327 = vpop.f32.mrf.mxu0
    %v328 = vadd.f32 %v283, %v327
    %329 = vdwg.mxu0
    %330 = vmatpush.msra.mxu0 0.0
    %331 = vmatpush.msra.mxu0 0.0
    %332 = vmatpush.msra.mxu0 0.0
    %333 = vmatpush.msra.mxu0 0.0
    %334 = vmatpush.msra.mxu0 0.0
    %335 = vmatpush.msra.mxu0 0.0
    %336 = vmatpush.msra.mxu0 0.0
    %337 = vmatpush.msra.mxu0 0.0
    %338 = vmatpush.msra.mxu0 0.0
    %339 = vmatpush.msra.mxu0 0.0
    %340 = vmatpush.msra.mxu0 0.0
    %341 = vmatpush.msra.mxu0 0.0
    %342 = vmatpush.msra.mxu0 0.0
    %343 = vmatpush.msra.mxu0 0.0
    %344 = vmatpush.msra.mxu0 %v263
    %345 = vmatpush.msra.mxu0 %v251
    %346 = vmatmul.f32.gmra.mxu0 %v308
    %v347 = vpop.f32.mrf.mxu0
    %v348 = vadd.f32 %v328, %v347
    %349 = vdwg.mxu0
    %350 = vmatpush.msra.mxu0 %v240
    %351 = vmatpush.msra.mxu0 %v228
    %352 = vmatpush.msra.mxu0 %v216
    %353 = vmatpush.msra.mxu0 %v204
    %354 = vmatpush.msra.mxu0 %v192
    %355 = vmatpush.msra.mxu0 %v180
    %356 = vmatpush.msra.mxu0 %v168
    %357 = vmatpush.msra.mxu0 %v156
    %358 = vmatpush.msra.mxu0 %v144
    %359 = vmatpush.msra.mxu0 %v132
    %360 = vmatpush.msra.mxu0 %v120
    %361 = vmatpush.msra.mxu0 %v108
    %362 = vmatpush.msra.mxu0 %v96
    %363 = vmatpush.msra.mxu0 %v84
    %364 = vmatpush.msra.mxu0 %v72
    %365 = vmatpush.msra.mxu0 %v60
    %366 = vmatmul.f32.gmra.mxu0 %v278
    %v367 = vpop.f32.mrf.mxu0
    %v368 = vadd.f32 %v284, %v367
    %369 = vdwg.mxu0
    %370 = vmatpush.msra.mxu0 0.0
    %371 = vmatpush.msra.mxu0 0.0
    %372 = vmatpush.msra.mxu0 0.0
    %373 = vmatpush.msra.mxu0 0.0
    %374 = vmatpush.msra.mxu0 0.0
    %375 = vmatpush.msra.mxu0 0.0
    %376 = vmatpush.msra.mxu0 0.0
    %377 = vmatpush.msra.mxu0 0.0
    %378 = vmatpush.msra.mxu0 0.0
    %379 = vmatpush.msra.mxu0 0.0
    %380 = vmatpush.msra.mxu0 0.0
    %381 = vmatpush.msra.mxu0 0.0
    %382 = vmatpush.msra.mxu0 0.0
    %383 = vmatpush.msra.mxu0 0.0
    %384 = vmatpush.msra.mxu0 %v264
    %385 = vmatpush.msra.mxu0 %v252
    %386 = vmatmul.f32.gmra.mxu0 %v308
    %v387 = vpop.f32.mrf.mxu0
    %v388 = vadd.f32 %v368, %v387
    %389 = vdwg.mxu0
    %390 = vmatpush.msra.mxu0 %v241
    %391 = vmatpush.msra.mxu0 %v229
    %392 = vmatpush.msra.mxu0 %v217
    %393 = vmatpush.msra.mxu0 %v205
    %394 = vmatpush.msra.mxu0 %v193
    %395 = vmatpush.msra.mxu0 %v181
    %396 = vmatpush.msra.mxu0 %v169
    %397 = vmatpush.msra.mxu0 %v157
    %398 = vmatpush.msra.mxu0 %v145
    %399 = vmatpush.msra.mxu0 %v133
    %400 = vmatpush.msra.mxu0 %v121
    %401 = vmatpush.msra.mxu0 %v109
    %402 = vmatpush.msra.mxu0 %v97
    %403 = vmatpush.msra.mxu0 %v85
    %404 = vmatpush.msra.mxu0 %v73
    %405 = vmatpush.msra.mxu0 %v61
    %406 = vmatmul.f32.gmra.mxu0 %v278
    %v407 = vpop.f32.mrf.mxu0
    %v408 = vadd.f32 %v285, %v407
    %409 = vdwg.mxu0
    %410 = vmatpush.msra.mxu0 0.0
    %411 = vmatpush.msra.mxu0 0.0
    %412 = vmatpush.msra.mxu0 0.0
    %413 = vmatpush.msra.mxu0 0.0
    %414 = vmatpush.msra.mxu0 0.0
    %415 = vmatpush.msra.mxu0 0.0
    %416 = vmatpush.msra.mxu0 0.0
    %417 = vmatpush.msra.mxu0 0.0
    %418 = vmatpush.msra.mxu0 0.0
    %419 = vmatpush.msra.mxu0 0.0
    %420 = vmatpush.msra.mxu0 0.0
    %421 = vmatpush.msra.mxu0 0.0
    %422 = vmatpush.msra.mxu0 0.0
    %423 = vmatpush.msra.mxu0 0.0
    %424 = vmatpush.msra.mxu0 %v265
    %425 = vmatpush.msra.mxu0 %v253
    %426 = vmatmul.f32.gmra.mxu0 %v308
    %v427 = vpop.f32.mrf.mxu0
    %v428 = vadd.f32 %v408, %v427
    %429 = vdwg.mxu0
    %430 = vmatpush.msra.mxu0 %v242
    %431 = vmatpush.msra.mxu0 %v230
    %432 = vmatpush.msra.mxu0 %v218
    %433 = vmatpush.msra.mxu0 %v206
    %434 = vmatpush.msra.mxu0 %v194
    %435 = vmatpush.msra.mxu0 %v182
    %436 = vmatpush.msra.mxu0 %v170
    %437 = vmatpush.msra.mxu0 %v158
    %438 = vmatpush.msra.mxu0 %v146
    %439 = vmatpush.msra.mxu0 %v134
    %440 = vmatpush.msra.mxu0 %v122
    %441 = vmatpush.msra.mxu0 %v110
    %442 = vmatpush.msra.mxu0 %v98
    %443 = vmatpush.msra.mxu0 %v86
    %444 = vmatpush.msra.mxu0 %v74
    %445 = vmatpush.msra.mxu0 %v62
    %446 = vmatmul.f32.gmra.mxu0 %v278
    %v447 = vpop.f32.mrf.mxu0
    %v448 = vadd.f32 %v286, %v447
    %449 = vdwg.mxu0
    %450 = vmatpush.msra.mxu0 0.0
    %451 = vmatpush.msra.mxu0 0.0
    %452 = vmatpush.msra.mxu0 0.0
    %453 = vmatpush.msra.mxu0 0.0
    %454 = vmatpush.msra.mxu0 0.0
    %455 = vmatpush.msra.mxu0 0.0
    %456 = vmatpush.msra.mxu0 0.0
    %457 = vmatpush.msra.mxu0 0.0
    %458 = vmatpush.msra.mxu0 0.0
    %459 = vmatpush.msra.mxu0 0.0
    %460 = vmatpush.msra.mxu0 0.0
    %461 = vmatpush.msra.mxu0 0.0
    %462 = vmatpush.msra.mxu0 0.0
    %463 = vmatpush.msra.mxu0 0.0
    %464 = vmatpush.msra.mxu0 %v266
    %465 = vmatpush.msra.mxu0 %v254
    %466 = vmatmul.f32.gmra.mxu0 %v308
    %v467 = vpop.f32.mrf.mxu0
    %v468 = vadd.f32 %v448, %v467
    %469 = vdwg.mxu0
    %470 = vmatpush.msra.mxu0 %v243
    %471 = vmatpush.msra.mxu0 %v231
    %472 = vmatpush.msra.mxu0 %v219
    %473 = vmatpush.msra.mxu0 %v207
    %474 = vmatpush.msra.mxu0 %v195
    %475 = vmatpush.msra.mxu0 %v183
    %476 = vmatpush.msra.mxu0 %v171
    %477 = vmatpush.msra.mxu0 %v159
    %478 = vmatpush.msra.mxu0 %v147
    %479 = vmatpush.msra.mxu0 %v135
    %480 = vmatpush.msra.mxu0 %v123
    %481 = vmatpush.msra.mxu0 %v111
    %482 = vmatpush.msra.mxu0 %v99
    %483 = vmatpush.msra.mxu0 %v87
    %484 = vmatpush.msra.mxu0 %v75
    %485 = vmatpush.msra.mxu0 %v63
    %486 = vmatmul.f32.gmra.mxu0 %v278
    %v487 = vpop.f32.mrf.mxu0
    %v488 = vadd.f32 %v287, %v487
    %489 = vdwg.mxu0
    %490 = vmatpush.msra.mxu0 0.0
    %491 = vmatpush.msra.mxu0 0.0
    %492 = vmatpush.msra.mxu0 0.0
    %493 = vmatpush.msra.mxu0 0.0
    %494 = vmatpush.msra.mxu0 0.0
    %495 = vmatpush.msra.mxu0 0.0
    %496 = vmatpush.msra.mxu0 0.0
    %497 = vmatpush.msra.mxu0 0.0
    %498 = vmatpush.msra.mxu0 0.0
    %499 = vmatpush.msra.mxu0 0.0
    %500 = vmatpush.msra.mxu0 0.0
    %501 = vmatpush.msra.mxu0 0.0
    %502 = vmatpush.msra.mxu0 0.0
    %503 = vmatpush.msra.mxu0 0.0
    %504 = vmatpush.msra.mxu0 %v267
    %505 = vmatpush.msra.mxu0 %v255
    %506 = vmatmul.f32.gmra.mxu0 %v308
    %v507 = vpop.f32.mrf.mxu0
    %v508 = vadd.f32 %v488, %v507
    %509 = vdwg.mxu0
    %510 = vmatpush.msra.mxu0 %v244
    %511 = vmatpush.msra.mxu0 %v232
    %512 = vmatpush.msra.mxu0 %v220
    %513 = vmatpush.msra.mxu0 %v208
    %514 = vmatpush.msra.mxu0 %v196
    %515 = vmatpush.msra.mxu0 %v184
    %516 = vmatpush.msra.mxu0 %v172
    %517 = vmatpush.msra.mxu0 %v160
    %518 = vmatpush.msra.mxu0 %v148
    %519 = vmatpush.msra.mxu0 %v136
    %520 = vmatpush.msra.mxu0 %v124
    %521 = vmatpush.msra.mxu0 %v112
    %522 = vmatpush.msra.mxu0 %v100
    %523 = vmatpush.msra.mxu0 %v88
    %524 = vmatpush.msra.mxu0 %v76
    %525 = vmatpush.msra.mxu0 %v64
    %526 = vmatmul.f32.gmra.mxu0 %v278
    %v527 = vpop.f32.mrf.mxu0
    %v528 = vadd.f32 %v288, %v527
    %529 = vdwg.mxu0
    %530 = vmatpush.msra.mxu0 0.0
    %531 = vmatpush.msra.mxu0 0.0
    %532 = vmatpush.msra.mxu0 0.0
    %533 = vmatpush.msra.mxu0 0.0
    %534 = vmatpush.msra.mxu0 0.0
    %535 = vmatpush.msra.mxu0 0.0
    %536 = vmatpush.msra.mxu0 0.0
    %537 = vmatpush.msra.mxu0 0.0
    %538 = vmatpush.msra.mxu0 0.0
    %539 = vmatpush.msra.mxu0 0.0
    %540 = vmatpush.msra.mxu0 0.0
    %541 = vmatpush.msra.mxu0 0.0
    %542 = vmatpush.msra.mxu0 0.0
    %543 = vmatpush.msra.mxu0 0.0
    %544 = vmatpush.msra.mxu0 %v268
    %545 = vmatpush.msra.mxu0 %v256
    %546 = vmatmul.f32.gmra.mxu0 %v308
    %v547 = vpop.f32.mrf.mxu0
    %v548 = vadd.f32 %v528, %v547
    %549 = vdwg.mxu0
    %550 = vmatpush.msra.mxu0 %v245
    %551 = vmatpush.msra.mxu0 %v233
    %552 = vmatpush.msra.mxu0 %v221
    %553 = vmatpush.msra.mxu0 %v209
    %554 = vmatpush.msra.mxu0 %v197
    %555 = vmatpush.msra.mxu0 %v185
    %556 = vmatpush.msra.mxu0 %v173
    %557 = vmatpush.msra.mxu0 %v161
    %558 = vmatpush.msra.mxu0 %v149
    %559 = vmatpush.msra.mxu0 %v137
    %560 = vmatpush.msra.mxu0 %v125
    %561 = vmatpush.msra.mxu0 %v113
    %562 = vmatpush.msra.mxu0 %v101
    %563 = vmatpush.msra.mxu0 %v89
    %564 = vmatpush.msra.mxu0 %v77
    %565 = vmatpush.msra.mxu0 %v65
    %566 = vmatmul.f32.gmra.mxu0 %v278
    %v567 = vpop.f32.mrf.mxu0
    %v568 = vadd.f32 %v289, %v567
    %569 = vdwg.mxu0
    %570 = vmatpush.msra.mxu0 0.0
    %571 = vmatpush.msra.mxu0 0.0
    %572 = vmatpush.msra.mxu0 0.0
    %573 = vmatpush.msra.mxu0 0.0
    %574 = vmatpush.msra.mxu0 0.0
    %575 = vmatpush.msra.mxu0 0.0
    %576 = vmatpush.msra.mxu0 0.0
    %577 = vmatpush.msra.mxu0 0.0
    %578 = vmatpush.msra.mxu0 0.0
    %579 = vmatpush.msra.mxu0 0.0
    %580 = vmatpush.msra.mxu0 0.0
    %581 = vmatpush.msra.mxu0 0.0
    %582 = vmatpush.msra.mxu0 0.0
    %583 = vmatpush.msra.mxu0 0.0
    %584 = vmatpush.msra.mxu0 %v269
    %585 = vmatpush.msra.mxu0 %v257
    %586 = vmatmul.f32.gmra.mxu0 %v308
    %v587 = vpop.f32.mrf.mxu0
    %v588 = vadd.f32 %v568, %v587
    %589 = vdwg.mxu0
    %590 = vmatpush.msra.mxu0 %v246
    %591 = vmatpush.msra.mxu0 %v234
    %592 = vmatpush.msra.mxu0 %v222
    %593 = vmatpush.msra.mxu0 %v210
    %594 = vmatpush.msra.mxu0 %v198
    %595 = vmatpush.msra.mxu0 %v186
    %596 = vmatpush.msra.mxu0 %v174
    %597 = vmatpush.msra.mxu0 %v162
    %598 = vmatpush.msra.mxu0 %v150
    %599 = vmatpush.msra.mxu0 %v138
    %600 = vmatpush.msra.mxu0 %v126
    %601 = vmatpush.msra.mxu0 %v114
    %602 = vmatpush.msra.mxu0 %v102
    %603 = vmatpush.msra.mxu0 %v90
    %604 = vmatpush.msra.mxu0 %v78
    %605 = vmatpush.msra.mxu0 %v66
    %606 = vmatmul.f32.gmra.mxu0 %v278
    %v607 = vpop.f32.mrf.mxu0
    %v608 = vadd.f32 %v290, %v607
    %609 = vdwg.mxu0
    %610 = vmatpush.msra.mxu0 0.0
    %611 = vmatpush.msra.mxu0 0.0
    %612 = vmatpush.msra.mxu0 0.0
    %613 = vmatpush.msra.mxu0 0.0
    %614 = vmatpush.msra.mxu0 0.0
    %615 = vmatpush.msra.mxu0 0.0
    %616 = vmatpush.msra.mxu0 0.0
    %617 = vmatpush.msra.mxu0 0.0
    %618 = vmatpush.msra.mxu0 0.0
    %619 = vmatpush.msra.mxu0 0.0
    %620 = vmatpush.msra.mxu0 0.0
    %621 = vmatpush.msra.mxu0 0.0
    %622 = vmatpush.msra.mxu0 0.0
    %623 = vmatpush.msra.mxu0 0.0
    %624 = vmatpush.msra.mxu0 %v270
    %625 = vmatpush.msra.mxu0 %v258
    %626 = vmatmul.f32.gmra.mxu0 %v308
    %v627 = vpop.f32.mrf.mxu0
    %v628 = vadd.f32 %v608, %v627
    %629 = vdwg.mxu0
    %630 = vmatpush.msra.mxu0 %v247
    %631 = vmatpush.msra.mxu0 %v235
    %632 = vmatpush.msra.mxu0 %v223
    %633 = vmatpush.msra.mxu0 %v211
    %634 = vmatpush.msra.mxu0 %v199
    %635 = vmatpush.msra.mxu0 %v187
    %636 = vmatpush.msra.mxu0 %v175
    %637 = vmatpush.msra.mxu0 %v163
    %638 = vmatpush.msra.mxu0 %v151
    %639 = vmatpush.msra.mxu0 %v139
    %640 = vmatpush.msra.mxu0 %v127
    %641 = vmatpush.msra.mxu0 %v115
    %642 = vmatpush.msra.mxu0 %v103
    %643 = vmatpush.msra.mxu0 %v91
    %644 = vmatpush.msra.mxu0 %v79
    %645 = vmatpush.msra.mxu0 %v67
    %646 = vmatmul.f32.gmra.mxu0 %v278
    %v647 = vpop.f32.mrf.mxu0
    %v648 = vadd.f32 %v291, %v647
    %649 = vdwg.mxu0
    %650 = vmatpush.msra.mxu0 0.0
    %651 = vmatpush.msra.mxu0 0.0
    %652 = vmatpush.msra.mxu0 0.0
    %653 = vmatpush.msra.mxu0 0.0
    %654 = vmatpush.msra.mxu0 0.0
    %655 = vmatpush.msra.mxu0 0.0
    %656 = vmatpush.msra.mxu0 0.0
    %657 = vmatpush.msra.mxu0 0.0
    %658 = vmatpush.msra.mxu0 0.0
    %659 = vmatpush.msra.mxu0 0.0
    %660 = vmatpush.msra.mxu0 0.0
    %661 = vmatpush.msra.mxu0 0.0
    %662 = vmatpush.msra.mxu0 0.0
    %663 = vmatpush.msra.mxu0 0.0
    %664 = vmatpush.msra.mxu0 %v271
    %665 = vmatpush.msra.mxu0 %v259
    %666 = vmatmul.f32.gmra.mxu0 %v308
    %v667 = vpop.f32.mrf.mxu0
    %v668 = vadd.f32 %v648, %v667
    %669 = vdwg.mxu0
    %670 = vmatpush.msra.mxu0 %v248
    %671 = vmatpush.msra.mxu0 %v236
    %672 = vmatpush.msra.mxu0 %v224
    %673 = vmatpush.msra.mxu0 %v212
    %674 = vmatpush.msra.mxu0 %v200
    %675 = vmatpush.msra.mxu0 %v188
    %676 = vmatpush.msra.mxu0 %v176
    %677 = vmatpush.msra.mxu0 %v164
    %678 = vmatpush.msra.mxu0 %v152
    %679 = vmatpush.msra.mxu0 %v140
    %680 = vmatpush.msra.mxu0 %v128
    %681 = vmatpush.msra.mxu0 %v116
    %682 = vmatpush.msra.mxu0 %v104
    %683 = vmatpush.msra.mxu0 %v92
    %684 = vmatpush.msra.mxu0 %v80
    %685 = vmatpush.msra.mxu0 %v68
    %686 = vmatmul.f32.gmra.mxu0 %v278
    %v687 = vpop.f32.mrf.mxu0
    %v688 = vadd.f32 %v292, %v687
    %689 = vdwg.mxu0
    %690 = vmatpush.msra.mxu0 0.0
    %691 = vmatpush.msra.mxu0 0.0
    %692 = vmatpush.msra.mxu0 0.0
    %693 = vmatpush.msra.mxu0 0.0
    %694 = vmatpush.msra.mxu0 0.0
    %695 = vmatpush.msra.mxu0 0.0
    %696 = vmatpush.msra.mxu0 0.0
    %697 = vmatpush.msra.mxu0 0.0
    %698 = vmatpush.msra.mxu0 0.0
    %699 = vmatpush.msra.mxu0 0.0
    %700 = vmatpush.msra.mxu0 0.0
    %701 = vmatpush.msra.mxu0 0.0
    %702 = vmatpush.msra.mxu0 0.0
    %703 = vmatpush.msra.mxu0 0.0
    %704 = vmatpush.msra.mxu0 %v272
    %705 = vmatpush.msra.mxu0 %v260
    %706 = vmatmul.f32.gmra.mxu0 %v308
    %v707 = vpop.f32.mrf.mxu0
    %v708 = vadd.f32 %v688, %v707
    %709 = vdwg.mxu0
    %710 = vmatpush.msra.mxu0 %v249
    %711 = vmatpush.msra.mxu0 %v237
    %712 = vmatpush.msra.mxu0 %v225
    %713 = vmatpush.msra.mxu0 %v213
    %714 = vmatpush.msra.mxu0 %v201
    %715 = vmatpush.msra.mxu0 %v189
    %716 = vmatpush.msra.mxu0 %v177
    %717 = vmatpush.msra.mxu0 %v165
    %718 = vmatpush.msra.mxu0 %v153
    %719 = vmatpush.msra.mxu0 %v141
    %720 = vmatpush.msra.mxu0 %v129
    %721 = vmatpush.msra.mxu0 %v117
    %722 = vmatpush.msra.mxu0 %v105
    %723 = vmatpush.msra.mxu0 %v93
    %724 = vmatpush.msra.mxu0 %v81
    %725 = vmatpush.msra.mxu0 %v69
    %726 = vmatmul.f32.gmra.mxu0 %v278
    %v727 = vpop.f32.mrf.mxu0
    %v728 = vadd.f32 %v293, %v727
    %729 = vdwg.mxu0
    %730 = vmatpush.msra.mxu0 0.0
    %731 = vmatpush.msra.mxu0 0.0
    %732 = vmatpush.msra.mxu0 0.0
    %733 = vmatpush.msra.mxu0 0.0
    %734 = vmatpush.msra.mxu0 0.0
    %735 = vmatpush.msra.mxu0 0.0
    %736 = vmatpush.msra.mxu0 0.0
    %737 = vmatpush.msra.mxu0 0.0
    %738 = vmatpush.msra.mxu0 0.0
    %739 = vmatpush.msra.mxu0 0.0
    %740 = vmatpush.msra.mxu0 0.0
    %741 = vmatpush.msra.mxu0 0.0
    %742 = vmatpush.msra.mxu0 0.0
    %743 = vmatpush.msra.mxu0 0.0
    %744 = vmatpush.msra.mxu0 %v273
    %745 = vmatpush.msra.mxu0 %v261
    %746 = vmatmul.f32.gmra.mxu0 %v308
    %v747 = vpop.f32.mrf.mxu0
    %v748 = vadd.f32 %v728, %v747
    %749 = vdwg.mxu0
    %750 = vmatpush.msra.mxu0 %v250
    %751 = vmatpush.msra.mxu0 %v238
    %752 = vmatpush.msra.mxu0 %v226
    %753 = vmatpush.msra.mxu0 %v214
    %754 = vmatpush.msra.mxu0 %v202
    %755 = vmatpush.msra.mxu0 %v190
    %756 = vmatpush.msra.mxu0 %v178
    %757 = vmatpush.msra.mxu0 %v166
    %758 = vmatpush.msra.mxu0 %v154
    %759 = vmatpush.msra.mxu0 %v142
    %760 = vmatpush.msra.mxu0 %v130
    %761 = vmatpush.msra.mxu0 %v118
    %762 = vmatpush.msra.mxu0 %v106
    %763 = vmatpush.msra.mxu0 %v94
    %764 = vmatpush.msra.mxu0 %v82
    %765 = vmatpush.msra.mxu0 %v70
    %766 = vmatmul.f32.gmra.mxu0 %v278
    %v767 = vpop.f32.mrf.mxu0
    %v768 = vadd.f32 %v294, %v767
    %769 = vdwg.mxu0
    %770 = vmatpush.msra.mxu0 0.0
    %771 = vmatpush.msra.mxu0 0.0
    %772 = vmatpush.msra.mxu0 0.0
    %773 = vmatpush.msra.mxu0 0.0
    %774 = vmatpush.msra.mxu0 0.0
    %775 = vmatpush.msra.mxu0 0.0
    %776 = vmatpush.msra.mxu0 0.0
    %777 = vmatpush.msra.mxu0 0.0
    %778 = vmatpush.msra.mxu0 0.0
    %779 = vmatpush.msra.mxu0 0.0
    %780 = vmatpush.msra.mxu0 0.0
    %781 = vmatpush.msra.mxu0 0.0
    %782 = vmatpush.msra.mxu0 0.0
    %783 = vmatpush.msra.mxu0 0.0
    %784 = vmatpush.msra.mxu0 %v274
    %785 = vmatpush.msra.mxu0 %v262
    %786 = vmatmul.f32.gmra.mxu0 %v308
    %v787 = vpop.f32.mrf.mxu0
    %v788 = vadd.f32 %v768, %v787
    %789 = vdwg.mxu0
    %v802 = vrot.slane %v388, 7
    %v803 = vrot.slane %v428, 6
    %v804 = vrot.slane %v468, 5
    %v805 = vrot.slane %v508, 4
    %v806 = vrot.slane %v548, 3
    %v807 = vrot.slane %v588, 2
    %v808 = vrot.slane %v628, 1
    %v809 = vrot.slane %v708, 7
    %v810 = vrot.slane %v748, 6
    %v811 = vrot.slane %v788, 5
    %vm812 = vcmask 1040384
    %v813 = vsel %vm812, %v348, %v802
    %vm814 = vcmask 1042434
    %v815 = vsel %vm814, %v803, %v804
    %vm816 = vcmask 1041408
    %v817 = vsel %vm816, %v813, %v815
    %vm818 = vcmask 1044484
    %v819 = vsel %vm818, %v805, %v806
    %vm820 = vcmask 1046534
    %v821 = vsel %vm820, %v807, %v808
    %vm822 = vcmask 1045508
    %v823 = vsel %vm822, %v819, %v821
    %vm824 = vcmask 1043456
    %v825 = vsel %vm824, %v817, %v823
    %v826 = vsel %vm812, %v668, %v809
    %v827 = vsel %vm814, %v810, %v811
    %v828 = vsel %vm816, %v826, %v827
    %831 = vst [vmem:[%s3] sm:$0xff] %v825
    %v832 = vlaneseq
    %vm833 = vcmp.ge.s32.totalorder %v832, 0
    %vm834 = vcmp.lt.s32.totalorder %v832, 512
    %vm835 = vmand %vm833, %vm834
    %836 = vst.msk [vmem:[%s3 + $0x8] sm:$0xf] %vm835, %v828
    // Predicated region
    $region26: #{relu_conv1x1.1} parent=1 // pred_check
      _
    $region27: #{relu_conv1x1.1} parent=1 // pred_check_branch
      %838 = sbr.rel (0) target = $region29
    $region28: #{relu_conv1x1.1} parent=1 // pred_region
      _
    $region29: #{relu_conv1x1.1} parent=1 // pred_fallthru
      _
    // Predicated region
    $region30: #{relu_conv1x1.1} parent=1 // pred_check
      _
    $region31: #{relu_conv1x1.1} parent=1 // pred_check_branch
      %840 = sbr.rel (0) target = $region33
    $region32: #{relu_conv1x1.1} parent=1 // pred_region
      _
    $region33: #{relu_conv1x1.1} parent=1 // pred_fallthru
      _
    %841 = vsyncpa [#allocation3], 1
    %842 = vsyncpa [#allocation5], 1

</llo_original>
